<compile_context>
chip_gen: v6e
topology: v6e:2x2x1
jax: 0.10.0
libtpu: 0.0.40
codegen_flags: <defaults>
</compile_context>

<pallas_src>
import functools

import jax
import jax.numpy as jnp
from jax.experimental import pallas as pl
from jax.experimental.pallas import tpu as pltpu


def _bernoulli_decoder_kernel(zu_ref, zv_ref, w1_ref, b1_ref, w2_ref, b2_ref,
                              out_ref, *, matmul_dtype):
    # Elementwise "concat" (a Hadamard product in this module) — VPU.
    x = zu_ref[...] * zv_ref[...]                                      # (TN, D)
    # Hidden layer: one MXU matmul (f32 accumulation) + bias + ReLU.
    h = jnp.dot(x.astype(matmul_dtype), w1_ref[...],
                preferred_element_type=jnp.float32)                    # (TN, H)
    h = jnp.maximum(h + b1_ref[...], 0.0)
    # Output layer (H -> 1): VPU broadcast-multiply + XLU lane reduction
    # instead of an MXU matmul with a single useful output column.
    col = jnp.sum(h * w2_ref[...], axis=-1, keepdims=True)             # (TN, 1)
    # Relayout to a lane-dense row; bias + sigmoid run on dense vregs.
    logits = col.T + b2_ref[0]                                         # (1, TN)
    # One dense (2, TN) store: row 0 = logits, row 1 = probs = sigmoid(logits).
    out_ref[...] = jnp.concatenate([logits, jax.nn.sigmoid(logits)], axis=0)


def _round_up(x, m):
    return ((x + m - 1) // m) * m


def _choose_tiling(n, d, h, in_itemsize, tile_n=None):
    """Generation-aware row tile and VMEM limit."""
    try:
        vmem_phys = int(pltpu.get_tpu_info().vmem_capacity_bytes)
    except Exception:                      # conservative fallback (v7x-sized)
        vmem_phys = 64 << 20

    # Per-row VMEM footprint: zu/zv blocks are double-buffered and the D / H
    # minor dims are lane-padded to 128; x, h and h*w2 temporaries are f32.
    d_pad = max(_round_up(d, 128), 128)
    h_pad = max(_round_up(h, 128), 128)
    per_row = 4 * d_pad * in_itemsize + (d_pad + 2 * h_pad) * 4

    if vmem_phys >= (100 << 20):           # v5e / v6e: 128 MiB VMEM, 1 TC
        tile_n_max, min_steps = 16384, 1
    else:                                  # v7x: 64 MiB VMEM, 2 TCs
        tile_n_max, min_steps = 8192, 4
    # Keep the whole working set well under physical VMEM.
    tile_n_max = min(tile_n_max,
                     max(128, ((vmem_phys - (24 << 20)) // per_row) // 128 * 128))

    n_aligned = _round_up(n, 128)
    if tile_n is None:
        steps = pl.cdiv(n_aligned, tile_n_max)
        if min_steps > 1:
            # Make sure the "parallel" grid axis has enough steps to feed
            # both TensorCores on v7x.
            steps = max(steps, min(min_steps, n_aligned // 128))
        tile_n = _round_up(pl.cdiv(n_aligned, steps), 128)
    tile_n = max(128, min(_round_up(tile_n, 128), n_aligned))

    vmem_limit = int(min(vmem_phys - (8 << 20),
                         max(tile_n * per_row + (8 << 20), 32 << 20)))
    return tile_n, vmem_limit


def bernoulli_decoder(zu, zv, w1, b1, w2, b2, *, tile_n=None, matmul_dtype=None):
    N, D = zu.shape
    H = w1.shape[1]
    O = w2.shape[-1] if w2.ndim == 2 else 1
    assert O == 1, "edge decoder emits a single Bernoulli logit per edge"
    assert zv.shape == (N, D) and zu.dtype == zv.dtype

    if matmul_dtype is None:
        matmul_dtype = zu.dtype            # f32 in -> exact f32 MXU path

    tile_n, vmem_limit = _choose_tiling(N, D, H, zu.dtype.itemsize, tile_n)
    # Ragged last block: Pallas masks OOB reads/writes; rows are independent,
    # so garbage tail rows cannot affect valid output columns.
    grid = (pl.cdiv(N, tile_n),)
    full = lambda i: (0, 0)

    w1_c = w1.astype(matmul_dtype)
    b1_r = jnp.reshape(b1, (1, H)).astype(jnp.float32)      # defensive reshape
    w2_row = jnp.reshape(w2, (1, H)).astype(jnp.float32)    # (H,1) -> (1,H) row
    b2_s = jnp.reshape(b2, (1,)).astype(jnp.float32)        # scalar bias (SMEM)

    in_bytes = zu.dtype.itemsize
    cost = pl.CostEstimate(
        flops=2 * N * D * H + 4 * N * H + 2 * N * D + N,
        transcendentals=N,
        bytes_accessed=2 * N * D * in_bytes + 2 * N * 4 + (D * H + 2 * H + 1) * 4,
    )

    packed = pl.pallas_call(
        functools.partial(_bernoulli_decoder_kernel, matmul_dtype=matmul_dtype),
        out_shape=jax.ShapeDtypeStruct((2, N), jnp.float32),
        grid_spec=pltpu.PrefetchScalarGridSpec(
            num_scalar_prefetch=0,
            grid=grid,
            in_specs=[
                pl.BlockSpec((tile_n, D), lambda i: (i, 0)),        # zu
                pl.BlockSpec((tile_n, D), lambda i: (i, 0)),        # zv
                pl.BlockSpec((D, H), full),                         # w1 (resident)
                pl.BlockSpec((1, H), full),                         # b1
                pl.BlockSpec((1, H), full),                         # w2 (row form)
                pl.BlockSpec(memory_space=pltpu.MemorySpace.SMEM),  # b2 scalar
            ],
            # Lane-dense packed output: row 0 = logits, row 1 = probs.
            out_specs=pl.BlockSpec((2, tile_n), lambda i: (0, i)),
        ),
        compiler_params=pltpu.CompilerParams(
            dimension_semantics=("parallel",),
            vmem_limit_bytes=vmem_limit),
        cost_estimate=cost,
    )(zu, zv, w1_c, b1_r, w2_row, b2_s)

    logits = packed[0].reshape(N, 1)
    probs = packed[1].reshape(N, 1)
    return logits, probs


def _reference(zu, zv, w1, b1, w2, b2, matmul_dtype=None):
    x = zu * zv
    if matmul_dtype is not None:
        x = x.astype(matmul_dtype)
        w1 = w1.astype(matmul_dtype)
    h = jnp.maximum(
        jnp.dot(x, w1, preferred_element_type=jnp.float32) + b1.reshape(1, -1),
        0.0)
    logits = h @ w2.reshape(-1, 1) + b2.reshape(1, 1)
    return logits, jax.nn.sigmoid(logits)


if __name__ == "__main__":
    # Small, module-consistent shapes: N edges (ragged — not a multiple of 128,
    # to exercise the masked last block) with latent dim D;
    # decoder_net = Linear(D,H) -> ReLU -> Linear(H,1).
    N, D, H, O = 300, 32, 64, 1

    key = jax.random.PRNGKey(0)
    k_zu, k_zv, k_w1, k_b1, k_w2, k_b2 = jax.random.split(key, 6)

    zu = jax.random.normal(k_zu, (N, D), dtype=jnp.float32)
    zv = jax.random.normal(k_zv, (N, D), dtype=jnp.float32)

    # Deterministic synthetic decoder_net parameters.
    w1 = jax.random.normal(k_w1, (D, H), dtype=jnp.float32) * (1.0 / jnp.sqrt(D))
    b1 = jax.random.normal(k_b1, (H,), dtype=jnp.float32) * 0.01
    w2 = jax.random.normal(k_w2, (H, O), dtype=jnp.float32) * (1.0 / jnp.sqrt(H))
    b2 = jax.random.normal(k_b2, (1, O), dtype=jnp.float32) * 0.01

    # Exact f32 path (default).
    logits, probs = bernoulli_decoder(zu, zv, w1, b1, w2, b2)
    jax.block_until_ready((logits, probs))
    ref_logits, ref_probs = _reference(zu, zv, w1, b1, w2, b2)
    assert jnp.allclose(logits, ref_logits, atol=1e-5, rtol=1e-5)
    assert jnp.allclose(probs, ref_probs, atol=1e-5, rtol=1e-5)

    # bf16-MXU path (v5e / v7x perf recommendation): f32 stream, bf16 operands,
    # f32 accumulation.  Checked against the matching bf16 reference.
    logits_bf, probs_bf = bernoulli_decoder(zu, zv, w1, b1, w2, b2,
                                            matmul_dtype=jnp.bfloat16)
    jax.block_until_ready((logits_bf, probs_bf))
    ref_logits_bf, ref_probs_bf = _reference(zu, zv, w1, b1, w2, b2,
                                             matmul_dtype=jnp.bfloat16)
    assert jnp.allclose(logits_bf, ref_logits_bf, atol=5e-2, rtol=5e-2)
    assert jnp.allclose(probs_bf, ref_probs_bf, atol=5e-2, rtol=5e-2)

    # TODO(synk): torch.distributions.Independent/Bernoulli object itself has no
    # Pallas equivalent; the kernel returns its parameters (logits, probs).
    print("KERNEL_OK")
</pallas_src>

<mosaic_0001>
module attributes {stable_mosaic.version = 11 : i64} {
  func.func @_bernoulli_decoder_kernel(%arg0: i32, %arg1: memref<128x32xf32, #tpu.memory_space<vmem>>, %arg2: memref<128x32xf32, #tpu.memory_space<vmem>>, %arg3: memref<32x64xf32, #tpu.memory_space<vmem>>, %arg4: memref<1x64xf32, #tpu.memory_space<vmem>>, %arg5: memref<1x64xf32, #tpu.memory_space<vmem>>, %arg6: memref<1xf32, #tpu.memory_space<smem>>, %arg7: memref<2x128xf32, #tpu.memory_space<vmem>>) attributes {dimension_semantics = [#tpu.dimension_semantics<parallel>], iteration_bounds = array<i64: 3>, scalar_prefetch = 0 : i64, scratch_operands = 0 : i64, tpu.core_type = #tpu.core_type<tc>, window_params = [{transform_indices = @transform_0, window_bounds = array<i64: 128, 32>}, {transform_indices = @transform_1, window_bounds = array<i64: 128, 32>}, {pipeline_mode = #tpu.pipeline_mode<synchronous>, transform_indices = @transform_2, window_bounds = array<i64: 32, 64>}, {pipeline_mode = #tpu.pipeline_mode<synchronous>, transform_indices = @transform_3, window_bounds = array<i64: 1, 64>}, {pipeline_mode = #tpu.pipeline_mode<synchronous>, transform_indices = @transform_4, window_bounds = array<i64: 1, 64>}, {transform_indices = @transform_5, window_bounds = array<i64: 1>}, {transform_indices = @transform_6, window_bounds = array<i64: 2, 128>}]} {
    %c0 = arith.constant 0 : index
    %c0_0 = arith.constant 0 : index
    %0 = vector.load %arg1[%c0, %c0_0] : memref<128x32xf32, #tpu.memory_space<vmem>>, vector<128x32xf32>
    %c0_1 = arith.constant 0 : index
    %c0_2 = arith.constant 0 : index
    %1 = vector.load %arg2[%c0_1, %c0_2] : memref<128x32xf32, #tpu.memory_space<vmem>>, vector<128x32xf32>
    %2 = arith.mulf %0, %1 : vector<128x32xf32>
    %c0_3 = arith.constant 0 : index
    %c0_4 = arith.constant 0 : index
    %3 = vector.load %arg3[%c0_3, %c0_4] : memref<32x64xf32, #tpu.memory_space<vmem>>, vector<32x64xf32>
    %cst = arith.constant dense<0.000000e+00> : vector<128x64xf32>
    %4 = tpu.matmul %2, %3, %cst {dimension_numbers = #tpu.dot_dimension_numbers<[1], [0], [0], [1], [0, 0, 1, 1], [], []>} : vector<128x32xf32>, vector<32x64xf32>, vector<128x64xf32> -> vector<128x64xf32>
    %c0_5 = arith.constant 0 : index
    %c0_6 = arith.constant 0 : index
    %5 = vector.load %arg4[%c0_5, %c0_6] : memref<1x64xf32, #tpu.memory_space<vmem>>, vector<1x64xf32>
    %6 = vector.broadcast %5 : vector<1x64xf32> to vector<128x64xf32>
    %7 = arith.addf %4, %6 : vector<128x64xf32>
    %cst_7 = arith.constant 0.000000e+00 : f32
    %8 = vector.broadcast %cst_7 : f32 to vector<128x64xf32>
    %9 = arith.maximumf %7, %8 : vector<128x64xf32>
    %c0_8 = arith.constant 0 : index
    %c0_9 = arith.constant 0 : index
    %10 = vector.load %arg5[%c0_8, %c0_9] : memref<1x64xf32, #tpu.memory_space<vmem>>, vector<1x64xf32>
    %11 = vector.broadcast %10 : vector<1x64xf32> to vector<128x64xf32>
    %12 = arith.mulf %9, %11 : vector<128x64xf32>
    %cst_10 = arith.constant dense<0.000000e+00> : vector<128xf32>
    %13 = vector.multi_reduction <add>, %12, %cst_10 [1] : vector<128x64xf32> to vector<128xf32>
    %14 = vector.shape_cast %13 : vector<128xf32> to vector<128x1xf32>
    %15 = tpu.transpose %14, [1, 0] : vector<128x1xf32> -> vector<1x128xf32>
    %c0_11 = arith.constant 0 : index
    %16 = memref.load %arg6[%c0_11] : memref<1xf32, #tpu.memory_space<smem>>
    %17 = vector.broadcast %16 : f32 to vector<1x128xf32>
    %18 = arith.addf %15, %17 : vector<1x128xf32>
    %19 = arith.negf %18 : vector<1x128xf32>
    %20 = math.exp %19 : vector<1x128xf32>
    %cst_12 = arith.constant 1.000000e+00 : f32
    %21 = vector.broadcast %cst_12 : f32 to vector<1x128xf32>
    %22 = arith.addf %21, %20 : vector<1x128xf32>
    %23 = arith.divf %21, %22 : vector<1x128xf32>
    %24 = tpu.concatenate %18, %23 in 0 : vector<1x128xf32>, vector<1x128xf32> -> vector<2x128xf32>
    %c0_13 = arith.constant 0 : index
    %c0_14 = arith.constant 0 : index
    %25 = vector.load %arg7[%c0_13, %c0_14] : memref<2x128xf32, #tpu.memory_space<vmem>>, vector<2x128xf32>
    tpu.vector_store %arg7[%c0_13, %c0_14], %24 {strides = array<i32>} : memref<2x128xf32, #tpu.memory_space<vmem>>, vector<2x128xf32>,
    return
  }
  func.func @transform_0(%arg0: i32) -> (i32, i32) {
    %c0_i32 = arith.constant 0 : i32
    %c0_i32_0 = arith.constant 0 : i32
    return %arg0, %c0_i32 : i32, i32
  }
  func.func @transform_1(%arg0: i32) -> (i32, i32) {
    %c0_i32 = arith.constant 0 : i32
    %c0_i32_0 = arith.constant 0 : i32
    return %arg0, %c0_i32 : i32, i32
  }
  func.func @transform_2(%arg0: i32) -> (i32, i32) {
    %c0_i32 = arith.constant 0 : i32
    %c0_i32_0 = arith.constant 0 : i32
    %c0_i32_1 = arith.constant 0 : i32
    return %c0_i32, %c0_i32_0 : i32, i32
  }
  func.func @transform_3(%arg0: i32) -> (i32, i32) {
    %c0_i32 = arith.constant 0 : i32
    %c0_i32_0 = arith.constant 0 : i32
    %c0_i32_1 = arith.constant 0 : i32
    return %c0_i32, %c0_i32_0 : i32, i32
  }
  func.func @transform_4(%arg0: i32) -> (i32, i32) {
    %c0_i32 = arith.constant 0 : i32
    %c0_i32_0 = arith.constant 0 : i32
    %c0_i32_1 = arith.constant 0 : i32
    return %c0_i32, %c0_i32_0 : i32, i32
  }
  func.func @transform_5(%arg0: i32) -> i32 {
    %c0_i32 = arith.constant 0 : i32
    %c0_i32_0 = arith.constant 0 : i32
    return %c0_i32 : i32
  }
  func.func @transform_6(%arg0: i32) -> (i32, i32) {
    %c0_i32 = arith.constant 0 : i32
    %c0_i32_0 = arith.constant 0 : i32
    return %c0_i32, %arg0 : i32, i32
  }
}

</mosaic_0001>

<llo_original>
// kernel: tpu_custom_call.1
$region0: #{tpu_custom_call.1}
  #allocation0 [shape = 'u32[]', space=smem, size = 0x4, offset = 0x4, fixed_abs, tag = 'smem constant byte address 0x4 - core index']
  #allocation1 [shape = 'u32[144,128]{1,0:T(1,128)}', space=vmem, size = 0x12000, scoped, tag = 'internal scratch']
  #allocation2 [shape = 'f32[1]{0:T(128)S(6)}', space=smem, size = 0x200, scoped, tag = 'scoped memory for tpu_custom_call.1']
  %s0 = inlined_call_operand.vmem [shape: f32[300,32], index: 0, kind: input, shape index: {}]
  %s1 = inlined_call_operand.vmem [shape: f32[300,32], index: 1, kind: input, shape index: {}]
  %s2 = inlined_call_operand.vmem [shape: f32[32,64], index: 2, kind: input, shape index: {}]
  %s3 = inlined_call_operand.vmem [shape: f32[1,64], index: 3, kind: input, shape index: {}]
  %s4 = inlined_call_operand.vmem [shape: f32[1,64], index: 4, kind: input, shape index: {}]
  %s5 = inlined_call_operand.<no memory space> [shape: f32[1], index: 5, kind: input, shape index: {}]
  %s6 = inlined_call_operand.hbm [shape: f32[2,300], index: 6, kind: output, shape index: {}]
  %s7 = sld [smem:[#allocation0]]
  $region57: #{tpu_custom_call.1} parent=0
    _
  %s9 = ssub.s32 1, %s7
  %s10 = scalar_select 0, %s9, %s7
  %11 = sst [smem:[#allocation2]] %s5
  $region1: #{tpu_custom_call.1} parent=0
    #allocation3 [shape = 'u8[2048]{0}', space=vmem, size = 0x800, scoped, tag = 'output window, operand 0']
    #allocation4 [shape = 's32[2]{0}', space=sflag, size = 0x8, scoped, tag = 'scoped memory for tpu_custom_call.1']
    %12 = vsyncpa [#allocation4], 0
    %s13 = scalar_lea.sflag [#allocation4], 1
    %14 = vsyncpa %s13, 0
    loop: start=0, step=1, limit=5
    $region2: #{tpu_custom_call.1} parent=1 // loop_pre_header
      _
    $region3: #{tpu_custom_call.1} parent=1 // loop_header
      %s16 = sphi 0, %s20
      %p17 = scmp.ge.s32.totalorder %s16, 5
      %s26 = sphi 0, %s28
      %s29 = sphi 0, %s26
      %s30 = sphi 0, %s29
      %s46 = sphi 0, %s30
      %s52 = sphi 0, %s54
      %s55 = sphi 0, %s52
      %s56 = sphi 0, %s55
      %s72 = sphi 0, %s56
      %s76 = sphi 0, %s76
      %s78 = sphi 0, %s76
      %s79 = sphi 0, %s78
      %s93 = sphi 0, %s79
      %s97 = sphi 0, %s97
      %s99 = sphi 0, %s97
      %s100 = sphi 0, %s99
      %s114 = sphi 0, %s100
      %s118 = sphi 0, %s118
      %s120 = sphi 0, %s118
      %s121 = sphi 0, %s120
      %s135 = sphi 0, %s121
      %s139 = sphi 0, %s139
      %s141 = sphi 0, %s139
      %s142 = sphi 0, %s141
      %s156 = sphi 0, %s142
      %s162 = sphi 0, %s164
      %s165 = sphi 0, %s162
      %s166 = sphi 0, %s165
      %s182 = sphi 0, %s166
    $region4: #{tpu_custom_call.1} parent=1 // loop_header_branch
      %19 = sbr.rel (%p17) target = $region8
    $region5: #{tpu_custom_call.1} parent=1 // loop_body
      %s21 = ssub.s32 %s16, 1
      %s22 = ssub.s32 %s16, 2
      %s23 = sadd.s32 %s16, 1
      %s24 = ssub.s32 %s16, %s23
      %p25 = scmp.eq.s32.totalorder %s24, 0
      %s27 = sadd.s32 %s26, 1
      %s28 = scalar_select %p25, %s26, %s27
      %p31 = pneg %p25
      %p32 = scmp.eq.s32.totalorder %s16, 2
      %p33 = por %p31, %p32
      %p34 = scmp.ne.s32.totalorder %s26, %s29
      %p35 = scmp.eq.s32.totalorder %s16, 0
      %p36 = por %p34, %p35
      %p37 = scmp.ne.s32.totalorder %s26, %s29
      %p38 = scmp.eq.s32.totalorder %s21, 2
      %p39 = por %p37, %p38
      %p40 = scmp.ne.s32.totalorder %s29, %s30
      %p41 = scmp.eq.s32.totalorder %s21, 0
      %p42 = por %p40, %p41
      %p43 = scmp.ne.s32.totalorder %s29, %s30
      %p44 = scmp.eq.s32.totalorder %s22, 2
      %p45 = por %p43, %p44
      %p47 = scmp.ne.s32.totalorder %s30, %s46
      %p48 = scmp.eq.s32.totalorder %s22, 0
      %p49 = por %p47, %p48
      %s50 = ssub.s32 %s16, %s23
      %p51 = scmp.eq.s32.totalorder %s50, 0
      %s53 = sadd.s32 %s52, 1
      %s54 = scalar_select %p51, %s52, %s53
      %p57 = pneg %p51
      %p58 = scmp.eq.s32.totalorder %s16, 2
      %p59 = por %p57, %p58
      %p60 = scmp.ne.s32.totalorder %s52, %s55
      %p61 = scmp.eq.s32.totalorder %s16, 0
      %p62 = por %p60, %p61
      %p63 = scmp.ne.s32.totalorder %s52, %s55
      %p64 = scmp.eq.s32.totalorder %s21, 2
      %p65 = por %p63, %p64
      %p66 = scmp.ne.s32.totalorder %s55, %s56
      %p67 = scmp.eq.s32.totalorder %s21, 0
      %p68 = por %p66, %p67
      %p69 = scmp.ne.s32.totalorder %s55, %s56
      %p70 = scmp.eq.s32.totalorder %s22, 2
      %p71 = por %p69, %p70
      %p73 = scmp.ne.s32.totalorder %s56, %s72
      %p74 = scmp.eq.s32.totalorder %s22, 0
      %p75 = por %p73, %p74
      %s77 = sadd.s32 %s76, 1
      %p80 = scmp.eq.s32.totalorder %s16, 2
      %p81 = scmp.ne.s32.totalorder %s76, %s78
      %p82 = scmp.eq.s32.totalorder %s16, 0
      %p83 = por %p81, %p82
      %p84 = scmp.ne.s32.totalorder %s76, %s78
      %p85 = scmp.eq.s32.totalorder %s21, 2
      %p86 = por %p84, %p85
      %p87 = scmp.ne.s32.totalorder %s78, %s79
      %p88 = scmp.eq.s32.totalorder %s21, 0
      %p89 = por %p87, %p88
      %p90 = scmp.ne.s32.totalorder %s78, %s79
      %p91 = scmp.eq.s32.totalorder %s22, 2
      %p92 = por %p90, %p91
      %p94 = scmp.ne.s32.totalorder %s79, %s93
      %p95 = scmp.eq.s32.totalorder %s22, 0
      %p96 = por %p94, %p95
      %s98 = sadd.s32 %s97, 1
      %p101 = scmp.eq.s32.totalorder %s16, 2
      %p102 = scmp.ne.s32.totalorder %s97, %s99
      %p103 = scmp.eq.s32.totalorder %s16, 0
      %p104 = por %p102, %p103
      %p105 = scmp.ne.s32.totalorder %s97, %s99
      %p106 = scmp.eq.s32.totalorder %s21, 2
      %p107 = por %p105, %p106
      %p108 = scmp.ne.s32.totalorder %s99, %s100
      %p109 = scmp.eq.s32.totalorder %s21, 0
      %p110 = por %p108, %p109
      %p111 = scmp.ne.s32.totalorder %s99, %s100
      %p112 = scmp.eq.s32.totalorder %s22, 2
      %p113 = por %p111, %p112
      %p115 = scmp.ne.s32.totalorder %s100, %s114
      %p116 = scmp.eq.s32.totalorder %s22, 0
      %p117 = por %p115, %p116
      %s119 = sadd.s32 %s118, 1
      %p122 = scmp.eq.s32.totalorder %s16, 2
      %p123 = scmp.ne.s32.totalorder %s118, %s120
      %p124 = scmp.eq.s32.totalorder %s16, 0
      %p125 = por %p123, %p124
      %p126 = scmp.ne.s32.totalorder %s118, %s120
      %p127 = scmp.eq.s32.totalorder %s21, 2
      %p128 = por %p126, %p127
      %p129 = scmp.ne.s32.totalorder %s120, %s121
      %p130 = scmp.eq.s32.totalorder %s21, 0
      %p131 = por %p129, %p130
      %p132 = scmp.ne.s32.totalorder %s120, %s121
      %p133 = scmp.eq.s32.totalorder %s22, 2
      %p134 = por %p132, %p133
      %p136 = scmp.ne.s32.totalorder %s121, %s135
      %p137 = scmp.eq.s32.totalorder %s22, 0
      %p138 = por %p136, %p137
      %s140 = sadd.s32 %s139, 1
      %p143 = scmp.eq.s32.totalorder %s16, 2
      %p144 = scmp.ne.s32.totalorder %s139, %s141
      %p145 = scmp.eq.s32.totalorder %s16, 0
      %p146 = por %p144, %p145
      %p147 = scmp.ne.s32.totalorder %s139, %s141
      %p148 = scmp.eq.s32.totalorder %s21, 2
      %p149 = por %p147, %p148
      %p150 = scmp.ne.s32.totalorder %s141, %s142
      %p151 = scmp.eq.s32.totalorder %s21, 0
      %p152 = por %p150, %p151
      %p153 = scmp.ne.s32.totalorder %s141, %s142
      %p154 = scmp.eq.s32.totalorder %s22, 2
      %p155 = por %p153, %p154
      %p157 = scmp.ne.s32.totalorder %s142, %s156
      %p158 = scmp.eq.s32.totalorder %s22, 0
      %p159 = por %p157, %p158
      %s160 = ssub.s32 %s16, %s23
      %p161 = scmp.eq.s32.totalorder %s160, 0
      %s163 = sadd.s32 %s162, 1
      %s164 = scalar_select %p161, %s162, %s163
      %p167 = pneg %p161
      %p168 = scmp.eq.s32.totalorder %s16, 2
      %p169 = por %p167, %p168
      %p170 = scmp.ne.s32.totalorder %s162, %s165
      %p171 = scmp.eq.s32.totalorder %s16, 0
      %p172 = por %p170, %p171
      %p173 = scmp.ne.s32.totalorder %s162, %s165
      %p174 = scmp.eq.s32.totalorder %s21, 2
      %p175 = por %p173, %p174
      %p176 = scmp.ne.s32.totalorder %s165, %s166
      %p177 = scmp.eq.s32.totalorder %s21, 0
      %p178 = por %p176, %p177
      %p179 = scmp.ne.s32.totalorder %s165, %s166
      %p180 = scmp.eq.s32.totalorder %s22, 2
      %p181 = por %p179, %p180
      %p183 = scmp.ne.s32.totalorder %s166, %s182
      %p184 = scmp.eq.s32.totalorder %s22, 0
      %p185 = por %p183, %p184
      %p186 = scmp.le.s32.totalorder 1, %s16
      %p187 = scmp.lt.s32.totalorder %s16, 4
      %p188 = pnand %p186, %p187
      %p189 = pneg %p188
      // Predicated region
      $region9: #{tpu_custom_call.1} parent=5 // pred_check
        _
      $region10: #{tpu_custom_call.1} parent=5 // pred_check_branch
        %191 = sbr.rel (%p188) target = $region12
      $region11: #{tpu_custom_call.1} parent=5 // pred_region
        %s192 = ssub.s32 %s16, 1
        // Predicated region
        $region13: #{tpu_custom_call.1} parent=11 // pred_check
          %p193 = pneg %p89
        $region14: #{tpu_custom_call.1} parent=11 // pred_check_branch
          %195 = sbr.rel (%p193) target = $region16
        $region15: #{tpu_custom_call.1} parent=11 // pred_region
          _
        $region16: #{tpu_custom_call.1} parent=11 // pred_fallthru
          _
        // Predicated region
        $region17: #{tpu_custom_call.1} parent=11 // pred_check
          %p196 = pneg %p110
        $region18: #{tpu_custom_call.1} parent=11 // pred_check_branch
          %198 = sbr.rel (%p196) target = $region20
        $region19: #{tpu_custom_call.1} parent=11 // pred_region
          _
        $region20: #{tpu_custom_call.1} parent=11 // pred_fallthru
          _
        // Predicated region
        $region21: #{tpu_custom_call.1} parent=11 // pred_check
          %p199 = pneg %p131
        $region22: #{tpu_custom_call.1} parent=11 // pred_check_branch
          %201 = sbr.rel (%p199) target = $region24
        $region23: #{tpu_custom_call.1} parent=11 // pred_region
          _
        $region24: #{tpu_custom_call.1} parent=11 // pred_fallthru
          _
        // Predicated region
        $region25: #{tpu_custom_call.1} parent=11 // pred_check
          %p202 = pneg %p152
        $region26: #{tpu_custom_call.1} parent=11 // pred_check_branch
          %204 = sbr.rel (%p202) target = $region28
        $region27: #{tpu_custom_call.1} parent=11 // pred_region
          _
        $region28: #{tpu_custom_call.1} parent=11 // pred_fallthru
          _
      $region12: #{tpu_custom_call.1} parent=5 // pred_fallthru
        _
      %p205 = scmp.lt.s32.totalorder %s16, 3
      // Predicated region
      $region29: #{tpu_custom_call.1} parent=5 // pred_check
        %p206 = pneg %p205
      $region30: #{tpu_custom_call.1} parent=5 // pred_check_branch
        %208 = sbr.rel (%p206) target = $region32
      $region31: #{tpu_custom_call.1} parent=5 // pred_region
        // Predicated region
        $region33: #{tpu_custom_call.1} parent=31 // pred_check
          %p209 = pneg %p36
        $region34: #{tpu_custom_call.1} parent=31 // pred_check_branch
          %211 = sbr.rel (%p209) target = $region36
        $region35: #{tpu_custom_call.1} parent=31 // pred_region
          %s212 = smul.u32 16, %s16
          %s213 = ssub.s32 38, %s212
          %p214 = scmp.lt.s32.totalorder %s213, 16
          %s215 = scalar_select %p214, %s213, 16
          %s216 = smul.u32 128, %s215
          %p217 = scmp.lt.s32.totalorder %s212, 37
          %s218 = scalar_select %p217, %s212, 37
          %s219 = smul.addr %s218, 8
          %s220 = scalar_lea.vmem %s0, %s219
          %s221 = smul.u32 16, %s16
          %s222 = ssub.s32 38, %s221
          %p223 = scmp.lt.s32.totalorder %s222, 16
          %s224 = scalar_select %p223, %s222, 16
          %s225 = smul.u32 128, %s224
        $region36: #{tpu_custom_call.1} parent=31 // pred_fallthru
          _
        // Predicated region
        $region37: #{tpu_custom_call.1} parent=31 // pred_check
          %p226 = pneg %p62
        $region38: #{tpu_custom_call.1} parent=31 // pred_check_branch
          %228 = sbr.rel (%p226) target = $region40
        $region39: #{tpu_custom_call.1} parent=31 // pred_region
          %s229 = smul.u32 16, %s16
          %s230 = ssub.s32 38, %s229
          %p231 = scmp.lt.s32.totalorder %s230, 16
          %s232 = scalar_select %p231, %s230, 16
          %s233 = smul.u32 128, %s232
          %p234 = scmp.lt.s32.totalorder %s229, 37
          %s235 = scalar_select %p234, %s229, 37
          %s236 = smul.addr %s235, 8
          %s237 = scalar_lea.vmem %s1, %s236
          %s238 = smul.u32 16, %s16
          %s239 = ssub.s32 38, %s238
          %p240 = scmp.lt.s32.totalorder %s239, 16
          %s241 = scalar_select %p240, %s239, 16
          %s242 = smul.u32 128, %s241
        $region40: #{tpu_custom_call.1} parent=31 // pred_fallthru
          _
      $region32: #{tpu_custom_call.1} parent=5 // pred_fallthru
        _
      %p243 = scmp.le.s32.totalorder 1, %s16
      %p244 = scmp.lt.s32.totalorder %s16, 4
      %p245 = pnand %p243, %p244
      %p246 = pneg %p245
      // Predicated region
      $region41: #{tpu_custom_call.1} parent=5 // pred_check
        _
      $region42: #{tpu_custom_call.1} parent=5 // pred_check_branch
        %248 = sbr.rel (%p245) target = $region44
      $region43: #{tpu_custom_call.1} parent=5 // pred_region
        %s249 = ssub.s32 %s16, 1
        %s250 = smul.u32 16, %s21
        %s251 = ssub.s32 38, %s250
        %p252 = scmp.lt.s32.totalorder %s251, 16
        %s253 = scalar_select %p252, %s251, 16
        %s254 = smul.u32 128, %s253
        %p255 = scmp.lt.s32.totalorder %s250, 37
        %s256 = scalar_select %p255, %s250, 37
        %s257 = smul.addr %s256, 8
        %s258 = scalar_lea.vmem %s0, %s257
        %p259 = pneg %p42
        %p260 = pneg %p39
        %s261 = smul.u32 16, %s21
        %s262 = ssub.s32 38, %s261
        %p263 = scmp.lt.s32.totalorder %s262, 16
        %s264 = scalar_select %p263, %s262, 16
        %s265 = smul.u32 128, %s264
        %p266 = scmp.lt.s32.totalorder %s261, 37
        %s267 = scalar_select %p266, %s261, 37
        %s268 = smul.addr %s267, 8
        %s269 = scalar_lea.vmem %s1, %s268
        %p270 = pneg %p68
        %p271 = pneg %p65
        %p272 = pneg %p89
        %p273 = pneg %p86
        %p274 = pneg %p110
        %p275 = pneg %p107
        %p276 = pneg %p131
        %p277 = pneg %p128
        %p278 = pneg %p152
        %p279 = pneg %p149
        %p280 = pneg %p178
        %p281 = pneg %p175
        %s282 = sand.u32 %s165, 1
        %s283 = scalar_lea.sflag [#allocation4], %s282
        %s284 = sand.u32 %s165, 1
        %s285 = smul.addr %s284, 2
        %s286 = scalar_lea.vmem [#allocation3], %s285
        %s287 = smul.u32 16, %s21
        %s288 = ssub.s32 38, %s287
        %p289 = scmp.lt.s32.totalorder %s288, 16
        %s290 = scalar_select %p289, %s288, 16
        %s291 = smul.u32 128, %s290
        %p292 = scmp.lt.s32.totalorder %s287, 37
        %s293 = scalar_select %p292, %s287, 37
        %s294 = smul.addr %s293, 8
        %s295 = scalar_lea.vmem %s0, %s294
        %s296 = smul.u32 16, %s21
        %s297 = ssub.s32 38, %s296
        %p298 = scmp.lt.s32.totalorder %s297, 16
        %s299 = scalar_select %p298, %s297, 16
        %s300 = smul.u32 128, %s299
        %s301 = smul.u32 16, %s21
        %s302 = ssub.s32 38, %s301
        %p303 = scmp.lt.s32.totalorder %s302, 16
        %s304 = scalar_select %p303, %s302, 16
        %s305 = smul.u32 128, %s304
        %p306 = scmp.lt.s32.totalorder %s301, 37
        %s307 = scalar_select %p306, %s301, 37
        %s308 = smul.addr %s307, 8
        %s309 = scalar_lea.vmem %s1, %s308
        %s310 = smul.u32 16, %s21
        %s311 = ssub.s32 38, %s310
        %p312 = scmp.lt.s32.totalorder %s311, 16
        %s313 = scalar_select %p312, %s311, 16
        %s314 = smul.u32 128, %s313
        %v315 = vld [vmem:[%s295] sm:$0xff]
        %v316 = vld [vmem:[%s295 + $0x8] sm:$0xff]
        %v317 = vld [vmem:[%s295 + $0x10] sm:$0xff]
        %v318 = vld [vmem:[%s295 + $0x18] sm:$0xff]
        %v319 = vld [vmem:[%s295 + $0x20] sm:$0xff]
        %v320 = vld [vmem:[%s295 + $0x28] sm:$0xff]
        %v321 = vld [vmem:[%s295 + $0x30] sm:$0xff]
        %v322 = vld [vmem:[%s295 + $0x38] sm:$0xff]
        %v323 = vld [vmem:[%s295 + $0x40] sm:$0xff]
        %v324 = vld [vmem:[%s295 + $0x48] sm:$0xff]
        %v325 = vld [vmem:[%s295 + $0x50] sm:$0xff]
        %v326 = vld [vmem:[%s295 + $0x58] sm:$0xff]
        %v327 = vld [vmem:[%s295 + $0x60] sm:$0xff]
        %v328 = vld [vmem:[%s295 + $0x68] sm:$0xff]
        %v329 = vld [vmem:[%s295 + $0x70] sm:$0xff]
        %v330 = vld [vmem:[%s295 + $0x78] sm:$0xff]
        %v331 = vld [vmem:[%s309] sm:$0xff]
        %v332 = vld [vmem:[%s309 + $0x8] sm:$0xff]
        %v333 = vld [vmem:[%s309 + $0x10] sm:$0xff]
        %v334 = vld [vmem:[%s309 + $0x18] sm:$0xff]
        %v335 = vld [vmem:[%s309 + $0x20] sm:$0xff]
        %v336 = vld [vmem:[%s309 + $0x28] sm:$0xff]
        %v337 = vld [vmem:[%s309 + $0x30] sm:$0xff]
        %v338 = vld [vmem:[%s309 + $0x38] sm:$0xff]
        %v339 = vld [vmem:[%s309 + $0x40] sm:$0xff]
        %v340 = vld [vmem:[%s309 + $0x48] sm:$0xff]
        %v341 = vld [vmem:[%s309 + $0x50] sm:$0xff]
        %v342 = vld [vmem:[%s309 + $0x58] sm:$0xff]
        %v343 = vld [vmem:[%s309 + $0x60] sm:$0xff]
        %v344 = vld [vmem:[%s309 + $0x68] sm:$0xff]
        %v345 = vld [vmem:[%s309 + $0x70] sm:$0xff]
        %v346 = vld [vmem:[%s309 + $0x78] sm:$0xff]
        %v347 = vmul.f32 %v315, %v331
        %v348 = vmul.f32 %v316, %v332
        %v349 = vmul.f32 %v317, %v333
        %v350 = vmul.f32 %v318, %v334
        %v351 = vmul.f32 %v319, %v335
        %v352 = vmul.f32 %v320, %v336
        %v353 = vmul.f32 %v321, %v337
        %v354 = vmul.f32 %v322, %v338
        %v355 = vmul.f32 %v323, %v339
        %v356 = vmul.f32 %v324, %v340
        %v357 = vmul.f32 %v325, %v341
        %v358 = vmul.f32 %v326, %v342
        %v359 = vmul.f32 %v327, %v343
        %v360 = vmul.f32 %v328, %v344
        %v361 = vmul.f32 %v329, %v345
        %v362 = vmul.f32 %v330, %v346
        %v363 = vld [vmem:[%s2] sm:$0xff]
        %v364 = vld [vmem:[%s2 + $0x8] sm:$0xff]
        %v365 = vld [vmem:[%s2 + $0x10] sm:$0xff]
        %v366 = vld [vmem:[%s2 + $0x18] sm:$0xff]
        %v367 = vld [vmem:[%s3] sm:$0x1]
        %v369 = vlaneseq
        %v370 = vshrl.u32 %v369, 7
        %v371 = vsub.s32 0, %v370
        %v372 = vrot.slane %v367, %v371
        %vm374 = vcmask 261120
        %v376 = vsel %vm374, %v347, 0
        %v379 = vsel %vm374, %v348, 0
        %v382 = vsel %vm374, %v349, 0
        %v385 = vsel %vm374, %v350, 0
        %v388 = vsel %vm374, %v351, 0
        %v391 = vsel %vm374, %v352, 0
        %v394 = vsel %vm374, %v353, 0
        %v397 = vsel %vm374, %v354, 0
        %v400 = vsel %vm374, %v355, 0
        %v403 = vsel %vm374, %v356, 0
        %v406 = vsel %vm374, %v357, 0
        %v409 = vsel %vm374, %v358, 0
        %v412 = vsel %vm374, %v359, 0
        %v415 = vsel %vm374, %v360, 0
        %v418 = vsel %vm374, %v361, 0
        %v421 = vsel %vm374, %v362, 0
        %423 = vmatprep.subr.mxu0 0.0
        %424 = vmatpush1.msra.mxu0 0.0
        %425 = vmatprep.subr.mxu0 0.0
        %426 = vmatpush1.msra.mxu0 0.0
        %427 = vmatprep.subr.mxu0 0.0
        %428 = vmatpush1.msra.mxu0 0.0
        %429 = vmatprep.subr.mxu0 0.0
        %430 = vmatpush1.msra.mxu0 0.0
        %431 = vmatprep.subr.mxu0 0.0
        %432 = vmatpush1.msra.mxu0 0.0
        %433 = vmatprep.subr.mxu0 0.0
        %434 = vmatpush1.msra.mxu0 0.0
        %435 = vmatprep.subr.mxu0 0.0
        %436 = vmatpush1.msra.mxu0 0.0
        %437 = vmatprep.subr.mxu0 0.0
        %438 = vmatpush1.msra.mxu0 0.0
        %439 = vmatprep.subr.mxu0 0.0
        %440 = vmatpush1.msra.mxu0 0.0
        %441 = vmatprep.subr.mxu0 0.0
        %442 = vmatpush1.msra.mxu0 0.0
        %443 = vmatprep.subr.mxu0 0.0
        %444 = vmatpush1.msra.mxu0 0.0
        %445 = vmatprep.subr.mxu0 0.0
        %446 = vmatpush1.msra.mxu0 0.0
        %447 = vmatprep.subr.mxu0 0.0
        %448 = vmatpush1.msra.mxu0 %v366
        %449 = vmatprep.subr.mxu0 0.0
        %450 = vmatpush1.msra.mxu0 %v365
        %451 = vmatprep.subr.mxu0 0.0
        %452 = vmatpush1.msra.mxu0 %v364
        %453 = vmatprep.subr.mxu0 0.0
        %454 = vmatpush1.msra.mxu0 %v363
        %455 = vmatprep.subr.mxu0 0.0
        %456 = vmatpush2.msra.mxu0 0.0
        %457 = vmatprep.subr.mxu0 0.0
        %458 = vmatpush2.msra.mxu0 0.0
        %459 = vmatprep.subr.mxu0 0.0
        %460 = vmatpush2.msra.mxu0 0.0
        %461 = vmatprep.subr.mxu0 0.0
        %462 = vmatpush2.msra.mxu0 0.0
        %463 = vmatprep.subr.mxu0 0.0
        %464 = vmatpush2.msra.mxu0 0.0
        %465 = vmatprep.subr.mxu0 0.0
        %466 = vmatpush2.msra.mxu0 0.0
        %467 = vmatprep.subr.mxu0 0.0
        %468 = vmatpush2.msra.mxu0 0.0
        %469 = vmatprep.subr.mxu0 0.0
        %470 = vmatpush2.msra.mxu0 0.0
        %471 = vmatprep.subr.mxu0 0.0
        %472 = vmatpush2.msra.mxu0 0.0
        %473 = vmatprep.subr.mxu0 0.0
        %474 = vmatpush2.msra.mxu0 0.0
        %475 = vmatprep.subr.mxu0 0.0
        %476 = vmatpush2.msra.mxu0 0.0
        %477 = vmatprep.subr.mxu0 0.0
        %478 = vmatpush2.msra.mxu0 0.0
        %479 = vmatprep.subr.mxu0 0.0
        %480 = vmatpush2.msra.mxu0 0.0
        %481 = vmatprep.subr.mxu0 0.0
        %482 = vmatpush2.msra.mxu0 0.0
        %483 = vmatprep.subr.mxu0 0.0
        %484 = vmatpush2.msra.mxu0 0.0
        %485 = vmatprep.subr.mxu0 0.0
        %486 = vmatpush2.msra.mxu0 0.0
        %487 = vmatprep.mubr.f32.mxu0 0.0
        %488 = vmatmul.mubr.f32.gmra.mxu0 %v376
        %v489 = vpop.f32.mrf.mxu0
        %v490 = vadd.f32 %v372, %v489
        %v491 = vpop.f32.mrf.mxu0
        %492 = vmatprep.mubr.f32.mxu0 0.0
        %493 = vmatmul.mubr.f32.gmra.mxu0 %v379
        %v494 = vpop.f32.mrf.mxu0
        %v495 = vadd.f32 %v372, %v494
        %v496 = vpop.f32.mrf.mxu0
        %497 = vmatprep.mubr.f32.mxu0 0.0
        %498 = vmatmul.mubr.f32.gmra.mxu0 %v382
        %v499 = vpop.f32.mrf.mxu0
        %v500 = vadd.f32 %v372, %v499
        %v501 = vpop.f32.mrf.mxu0
        %502 = vmatprep.mubr.f32.mxu0 0.0
        %503 = vmatmul.mubr.f32.gmra.mxu0 %v385
        %v504 = vpop.f32.mrf.mxu0
        %v505 = vadd.f32 %v372, %v504
        %v506 = vpop.f32.mrf.mxu0
        %507 = vmatprep.mubr.f32.mxu0 0.0
        %508 = vmatmul.mubr.f32.gmra.mxu0 %v388
        %v509 = vpop.f32.mrf.mxu0
        %v510 = vadd.f32 %v372, %v509
        %v511 = vpop.f32.mrf.mxu0
        %512 = vmatprep.mubr.f32.mxu0 0.0
        %513 = vmatmul.mubr.f32.gmra.mxu0 %v391
        %v514 = vpop.f32.mrf.mxu0
        %v515 = vadd.f32 %v372, %v514
        %v516 = vpop.f32.mrf.mxu0
        %517 = vmatprep.mubr.f32.mxu0 0.0
        %518 = vmatmul.mubr.f32.gmra.mxu0 %v394
        %v519 = vpop.f32.mrf.mxu0
        %v520 = vadd.f32 %v372, %v519
        %v521 = vpop.f32.mrf.mxu0
        %522 = vmatprep.mubr.f32.mxu0 0.0
        %523 = vmatmul.mubr.f32.gmra.mxu0 %v397
        %v524 = vpop.f32.mrf.mxu0
        %v525 = vadd.f32 %v372, %v524
        %v526 = vpop.f32.mrf.mxu0
        %527 = vmatprep.mubr.f32.mxu0 0.0
        %528 = vmatmul.mubr.f32.gmra.mxu0 %v400
        %v529 = vpop.f32.mrf.mxu0
        %v530 = vadd.f32 %v372, %v529
        %v531 = vpop.f32.mrf.mxu0
        %532 = vmatprep.mubr.f32.mxu0 0.0
        %533 = vmatmul.mubr.f32.gmra.mxu0 %v403
        %v534 = vpop.f32.mrf.mxu0
        %v535 = vadd.f32 %v372, %v534
        %v536 = vpop.f32.mrf.mxu0
        %537 = vmatprep.mubr.f32.mxu0 0.0
        %538 = vmatmul.mubr.f32.gmra.mxu0 %v406
        %v539 = vpop.f32.mrf.mxu0
        %v540 = vadd.f32 %v372, %v539
        %v541 = vpop.f32.mrf.mxu0
        %542 = vmatprep.mubr.f32.mxu0 0.0
        %543 = vmatmul.mubr.f32.gmra.mxu0 %v409
        %v544 = vpop.f32.mrf.mxu0
        %v545 = vadd.f32 %v372, %v544
        %v546 = vpop.f32.mrf.mxu0
        %547 = vmatprep.mubr.f32.mxu0 0.0
        %548 = vmatmul.mubr.f32.gmra.mxu0 %v412
        %v549 = vpop.f32.mrf.mxu0
        %v550 = vadd.f32 %v372, %v549
        %v551 = vpop.f32.mrf.mxu0
        %552 = vmatprep.mubr.f32.mxu0 0.0
        %553 = vmatmul.mubr.f32.gmra.mxu0 %v415
        %v554 = vpop.f32.mrf.mxu0
        %v555 = vadd.f32 %v372, %v554
        %v556 = vpop.f32.mrf.mxu0
        %557 = vmatprep.mubr.f32.mxu0 0.0
        %558 = vmatmul.mubr.f32.gmra.mxu0 %v418
        %v559 = vpop.f32.mrf.mxu0
        %v560 = vadd.f32 %v372, %v559
        %v561 = vpop.f32.mrf.mxu0
        %562 = vmatprep.mubr.f32.mxu0 0.0
        %563 = vmatmul.mubr.f32.gmra.mxu0 %v421
        %v564 = vpop.f32.mrf.mxu0
        %v565 = vadd.f32 %v372, %v564
        %v566 = vpop.f32.mrf.mxu0
        %567 = vdwg.mxu0
        %v568 = vmax.f32 %v490, 0.0
        %v569 = vmax.f32 %v495, 0.0
        %v570 = vmax.f32 %v500, 0.0
        %v571 = vmax.f32 %v505, 0.0
        %v572 = vmax.f32 %v510, 0.0
        %v573 = vmax.f32 %v515, 0.0
        %v574 = vmax.f32 %v520, 0.0
        %v575 = vmax.f32 %v525, 0.0
        %v576 = vmax.f32 %v530, 0.0
        %v577 = vmax.f32 %v535, 0.0
        %v578 = vmax.f32 %v540, 0.0
        %v579 = vmax.f32 %v545, 0.0
        %v580 = vmax.f32 %v550, 0.0
        %v581 = vmax.f32 %v555, 0.0
        %v582 = vmax.f32 %v560, 0.0
        %v583 = vmax.f32 %v565, 0.0
        %v584 = vld [vmem:[%s4] sm:$0x1]
        %v586 = vlaneseq
        %v587 = vshrl.u32 %v586, 7
        %v588 = vsub.s32 0, %v587
        %v589 = vrot.slane %v584, %v588
        %v591 = vmul.f32 %v568, %v589
        %v592 = vmul.f32 %v569, %v589
        %v593 = vmul.f32 %v570, %v589
        %v594 = vmul.f32 %v571, %v589
        %v595 = vmul.f32 %v572, %v589
        %v596 = vmul.f32 %v573, %v589
        %v597 = vmul.f32 %v574, %v589
        %v598 = vmul.f32 %v575, %v589
        %v599 = vmul.f32 %v576, %v589
        %v600 = vmul.f32 %v577, %v589
        %v601 = vmul.f32 %v578, %v589
        %v602 = vmul.f32 %v579, %v589
        %v603 = vmul.f32 %v580, %v589
        %v604 = vmul.f32 %v581, %v589
        %v605 = vmul.f32 %v582, %v589
        %v606 = vmul.f32 %v583, %v589
        %vm607 = vcmask 523264
        %v608 = vsel %vm607, %v591, 0.0
        %609 = vadd.xlane.f32.xlu0 %v608
        %v610 = vpop.xlane.xlu0 %609
        %v611 = vsel %vm607, %v592, 0.0
        %612 = vadd.xlane.f32.xlu0 %v611
        %v613 = vpop.xlane.xlu0 %612
        %v614 = vsel %vm607, %v593, 0.0
        %615 = vadd.xlane.f32.xlu0 %v614
        %v616 = vpop.xlane.xlu0 %615
        %v617 = vsel %vm607, %v594, 0.0
        %618 = vadd.xlane.f32.xlu0 %v617
        %v619 = vpop.xlane.xlu0 %618
        %v620 = vsel %vm607, %v595, 0.0
        %621 = vadd.xlane.f32.xlu0 %v620
        %v622 = vpop.xlane.xlu0 %621
        %v623 = vsel %vm607, %v596, 0.0
        %624 = vadd.xlane.f32.xlu0 %v623
        %v625 = vpop.xlane.xlu0 %624
        %v626 = vsel %vm607, %v597, 0.0
        %627 = vadd.xlane.f32.xlu0 %v626
        %v628 = vpop.xlane.xlu0 %627
        %v629 = vsel %vm607, %v598, 0.0
        %630 = vadd.xlane.f32.xlu0 %v629
        %v631 = vpop.xlane.xlu0 %630
        %v632 = vsel %vm607, %v599, 0.0
        %633 = vadd.xlane.f32.xlu0 %v632
        %v634 = vpop.xlane.xlu0 %633
        %v635 = vsel %vm607, %v600, 0.0
        %636 = vadd.xlane.f32.xlu0 %v635
        %v637 = vpop.xlane.xlu0 %636
        %v638 = vsel %vm607, %v601, 0.0
        %639 = vadd.xlane.f32.xlu0 %v638
        %v640 = vpop.xlane.xlu0 %639
        %v641 = vsel %vm607, %v602, 0.0
        %642 = vadd.xlane.f32.xlu0 %v641
        %v643 = vpop.xlane.xlu0 %642
        %v644 = vsel %vm607, %v603, 0.0
        %645 = vadd.xlane.f32.xlu0 %v644
        %v646 = vpop.xlane.xlu0 %645
        %v647 = vsel %vm607, %v604, 0.0
        %648 = vadd.xlane.f32.xlu0 %v647
        %v649 = vpop.xlane.xlu0 %648
        %v650 = vsel %vm607, %v605, 0.0
        %651 = vadd.xlane.f32.xlu0 %v650
        %v652 = vpop.xlane.xlu0 %651
        %v653 = vsel %vm607, %v606, 0.0
        %654 = vadd.xlane.f32.xlu0 %v653
        %v655 = vpop.xlane.xlu0 %654
        %656 = vxpose.xlu0.b32.start [1/16] %v610, 128
        %657 = vxpose.xlu0.b32.cont [2/16] %v613, 128
        %658 = vxpose.xlu0.b32.cont [3/16] %v616, 128
        %659 = vxpose.xlu0.b32.cont [4/16] %v619, 128
        %660 = vxpose.xlu0.b32.cont [5/16] %v622, 128
        %661 = vxpose.xlu0.b32.cont [6/16] %v625, 128
        %662 = vxpose.xlu0.b32.cont [7/16] %v628, 128
        %663 = vxpose.xlu0.b32.cont [8/16] %v631, 128
        %664 = vxpose.xlu0.b32.cont [9/16] %v634, 128
        %665 = vxpose.xlu0.b32.cont [10/16] %v637, 128
        %666 = vxpose.xlu0.b32.cont [11/16] %v640, 128
        %667 = vxpose.xlu0.b32.cont [12/16] %v643, 128
        %668 = vxpose.xlu0.b32.cont [13/16] %v646, 128
        %669 = vxpose.xlu0.b32.cont [14/16] %v649, 128
        %670 = vxpose.xlu0.b32.cont [15/16] %v652, 128
        %671 = vxpose.xlu0.b32.end [16/16] %v655, 128
        %v672 = vpop.trf.xlu0
        %v673 = vpop.trf.xlu0
        %v674 = vpop.trf.xlu0
        %v675 = vpop.trf.xlu0
        %v676 = vpop.trf.xlu0
        %v677 = vpop.trf.xlu0
        %v678 = vpop.trf.xlu0
        %v679 = vpop.trf.xlu0
        %v680 = vpop.trf.xlu0
        %v681 = vpop.trf.xlu0
        %v682 = vpop.trf.xlu0
        %v683 = vpop.trf.xlu0
        %v684 = vpop.trf.xlu0
        %v685 = vpop.trf.xlu0
        %v686 = vpop.trf.xlu0
        %v687 = vpop.trf.xlu0
        %s688 = sld [smem:[#allocation2]]
        %v689 = vstv %s688
        %v690 = vadd.f32 %v672, %v689
        %v691 = vxor.u32 %v690, 2147483648
        %v692 = vmul.f32 %v691, 1.442695
        %v693 = vpow.pop %v692
        %v694 = vadd.f32 %v693, 1.0
        %v695 = vrcp.pop %v694
        %v696 = vmul.f32 1.0, %v695
        %v698 = vrot.slane %v696, 7
        %vm700 = vcmask 1040384
        %v701 = vsel %vm700, %v690, %v698
        %702 = vst [vmem:[%s286] sm:$0x3] %v701
        %s703 = sand.u32 %s165, 1
        %s704 = scalar_lea.sflag [#allocation4], %s703
        %s705 = sand.u32 %s165, 1
        %s706 = smul.addr %s705, 2
        %s707 = scalar_lea.vmem [#allocation3], %s706
        // Predicated region
        $region45: #{tpu_custom_call.1} parent=43 // pred_check
          %p708 = pneg %p175
        $region46: #{tpu_custom_call.1} parent=43 // pred_check_branch
          %710 = sbr.rel (%p708) target = $region48
        $region47: #{tpu_custom_call.1} parent=43 // pred_region
          %s712 = ssub.s32 32, 32
          %713 = vsyncadd %s704, %s712
          %s714 = smul.addr %s21, 32
          %s715 = scalar_lea.hbm %s6, %s714
          %s717 = sshll.u32 %s707, 4
          %s718 = int_to_ptr.vmem [resolvable:$true] %s717
          %720 = dma.vmem_to_hbm [thread:$0]  %s718, 32, %s715, %s704
        $region48: #{tpu_custom_call.1} parent=43 // pred_fallthru
          _
      $region44: #{tpu_custom_call.1} parent=5 // pred_fallthru
        _
      %p721 = scmp.le.s32.totalorder 2, %s16
      // Predicated region
      $region49: #{tpu_custom_call.1} parent=5 // pred_check
        %p722 = pneg %p721
      $region50: #{tpu_custom_call.1} parent=5 // pred_check_branch
        %724 = sbr.rel (%p722) target = $region52
      $region51: #{tpu_custom_call.1} parent=5 // pred_region
        %s725 = ssub.s32 %s16, 2
        // Predicated region
        $region53: #{tpu_custom_call.1} parent=51 // pred_check
          %p726 = pneg %p181
        $region54: #{tpu_custom_call.1} parent=51 // pred_check_branch
          %728 = sbr.rel (%p726) target = $region56
        $region55: #{tpu_custom_call.1} parent=51 // pred_region
          %s729 = sand.u32 %s166, 1
          %s730 = scalar_lea.sflag [#allocation4], %s729
          %s731 = sand.u32 %s166, 1
          %s732 = smul.addr %s731, 2
          %s733 = scalar_lea.vmem [#allocation3], %s732
          %734 = dma.done %s730, 32
        $region56: #{tpu_custom_call.1} parent=51 // pred_fallthru
          _
      $region52: #{tpu_custom_call.1} parent=5 // pred_fallthru
        _
    $region6: #{tpu_custom_call.1} parent=1 // loop_footer
      %s20 = sadd.s32 1, %s16
    $region7: #{tpu_custom_call.1} parent=1 // loop_footer_branch
      %15 = sbr.rel target = $region3
    $region8: #{tpu_custom_call.1} parent=1 // loop_exit
      _
    %735 = vsyncpa [#allocation4], 1
    %s736 = scalar_lea.sflag [#allocation4], 1
    %737 = vsyncpa %s736, 1

</llo_original>
